<compile_context>
chip_gen: v7x
topology: tpu7x:2x2x1
jax: 0.10.0
libtpu: 0.0.40
codegen_flags: <defaults>
</compile_context>

<pallas_src>
import functools

import jax
import jax.numpy as jnp
from jax.experimental import pallas as pl
from jax.experimental.pallas import tpu as pltpu


def _vmem_capacity_bytes():
    """Per-core VMEM capacity; conservative 64 MiB fallback (v7x) if query fails."""
    try:
        info = pltpu.get_tpu_info()
        cap = getattr(info, "vmem_capacity_bytes", None)
        if cap:
            return int(cap)
    except Exception:
        pass
    return 64 << 20


def _elastic_cosface_kernel(label_ref, margin_ref, logits_ref, out_ref, *, s, tc):
    # label_ref : (tb, 1)  int32  -- class index per row, -1 == ignore
    # margin_ref: (tb, 1)  f32    -- per-row sampled additive margin
    # logits_ref: (tb, tc)        -- cosine logits tile
    j = pl.program_id(1)
    # Shift the (tb,1) label into tile-local coordinates instead of shifting
    # the (tb,tc) iota: one narrow op instead of a full-width add + wide temp.
    local_label = label_ref[...] - j * tc
    col = jax.lax.broadcasted_iota(jnp.int32, logits_ref.shape, 1)
    # label == -1 (ignored row) can never equal a column index in [0, tc),
    # so no explicit validity mask is needed.
    hit = col == local_label                       # (tb, tc) via lane broadcast
    x = logits_ref[...].astype(jnp.float32)
    y = (x - jnp.where(hit, margin_ref[...], 0.0)) * s
    out_ref[...] = y.astype(out_ref.dtype)


def elastic_cosface(logits, label, margin, *, s=64.0, tb=None, tc=None,
                    out_dtype=None, donate_logits=False):
    """Scaled-margin logits.

    logits: (B, C) float, label: (B,) int (-1 == ignore), margin: (B,) float.
    Returns (logits - one_hot(label)*margin) * s with dtype `out_dtype`
    (defaults to logits.dtype; pass jnp.bfloat16 to halve write traffic).
    """
    B, C = logits.shape
    out_dtype = logits.dtype if out_dtype is None else jnp.dtype(out_dtype)
    itm_in = jnp.dtype(logits.dtype).itemsize
    itm_out = jnp.dtype(out_dtype).itemsize

    # Native packed sublane multiple: f32 -> 8, bf16 -> 16, int8/fp8 -> 32.
    sub_mult = max(8, 32 // max(1, min(itm_in, itm_out)))

    # Hardware-aware VMEM budget: ~48 MiB on v7x (64 MiB), ~96 MiB on v5e/v6e.
    vmem_cap = int(0.75 * _vmem_capacity_bytes())

    def round_rows(v):
        if v >= B:
            return B
        return max(sub_mult, (v // sub_mult) * sub_mult)

    def round_cols(v):
        if v >= C:
            return C
        return max(128, (v // 128) * 128)

    tb = round_rows(min(B, 256) if tb is None else min(int(tb), B))
    tc = round_cols(min(C, 8192) if tc is None else min(int(tc), C))

    def budget(tb_, tc_):
        # Double-buffered logits-in + out tiles, plus slack for the small
        # label/margin buffers and Mosaic internal scratch.
        return 2 * tb_ * tc_ * (itm_in + itm_out) + (4 << 20)

    # Shrink tc first (keeps lane-dense stores), then tb, to fit the cap.
    while budget(tb, tc) > vmem_cap and tc > 128 and tc < C or \
          (budget(tb, tc) > vmem_cap and tc > 128 and tc == C):
        tc = round_cols(tc // 2)
    while budget(tb, tc) > vmem_cap and tb > sub_mult:
        tb = round_rows(tb // 2)

    # Feed both v7x TensorCores: guarantee >= 2 blocks on a parallel axis.
    if pl.cdiv(B, tb) * pl.cdiv(C, tc) < 2:
        if B >= 2 * sub_mult:
            tb = round_rows(pl.cdiv(B, 2))
        elif C >= 256:
            tc = round_cols(pl.cdiv(C, 2))
        # else: problem too small to split; a single block is fine.

    label2 = label.reshape(B, 1).astype(jnp.int32)
    margin2 = margin.reshape(B, 1).astype(jnp.float32)

    grid = (pl.cdiv(B, tb), pl.cdiv(C, tc))  # rows outer, classes inner (fast)

    vmem_limit = int(max(min(budget(tb, tc), vmem_cap), 16 << 20))

    # Alias the logits HBM buffer to the output (PyTorch-style in-place update).
    # Saves HBM footprint only, not bandwidth.
    aliases = {2: 0} if (donate_logits and out_dtype == logits.dtype) else {}

    kernel = functools.partial(_elastic_cosface_kernel, s=float(s), tc=tc)
    return pl.pallas_call(
        kernel,
        out_shape=jax.ShapeDtypeStruct((B, C), out_dtype),
        grid_spec=pltpu.PrefetchScalarGridSpec(
            num_scalar_prefetch=0,
            grid=grid,
            in_specs=[
                # label/margin: same block for every j -> stays VMEM-resident
                # across the inner class sweep.
                pl.BlockSpec((tb, 1), lambda i, j: (i, 0)),
                pl.BlockSpec((tb, 1), lambda i, j: (i, 0)),
                pl.BlockSpec((tb, tc), lambda i, j: (i, j)),
            ],
            out_specs=pl.BlockSpec((tb, tc), lambda i, j: (i, j)),
        ),
        compiler_params=pltpu.CompilerParams(
            dimension_semantics=("parallel", "parallel"),
            vmem_limit_bytes=vmem_limit),
        input_output_aliases=aliases,
    )(label2, margin2, logits)


def _reference(logits, label, margin, s):
    B, C = logits.shape
    valid = label != -1
    one_hot = (jnp.arange(C)[None, :] == label[:, None]) & valid[:, None]
    return (logits.astype(jnp.float32)
            - jnp.where(one_hot, margin[:, None], 0.0)) * s


if __name__ == "__main__":
    s_param, m_param, std_param = 64.0, 0.35, 0.0125

    # --- Test 1: small shape; grid gets split along the class axis so both
    # TensorCores would be fed; aliased (in-place) output.
    B, C = 8, 256
    key = jax.random.PRNGKey(0)
    k_logits, k_label, k_margin, k_rest = jax.random.split(key, 4)

    logits = jax.random.normal(k_logits, (B, C), dtype=jnp.float32) * 0.5
    label = jax.random.randint(k_label, (B,), 0, C, dtype=jnp.int32)
    label = label.at[3].set(-1)  # one ignored row, like label == -1 in torch
    margin = m_param + std_param * jax.random.normal(k_margin, (B,), dtype=jnp.float32)

    ref = _reference(logits, label, margin, s_param)   # computed before donation
    out = elastic_cosface(logits, label, margin, s=s_param, donate_logits=True)
    out = jax.block_until_ready(out)
    assert jnp.allclose(out, ref, atol=1e-5), "mismatch vs reference (test 1)"

    # --- Test 2: multi-block grid; exercises column offsets via program_id and
    # label/margin residency across the inner class axis.
    B2, C2 = 32, 1024
    ka, kb, kc, kd = jax.random.split(k_rest, 4)
    logits_b = jax.random.normal(ka, (B2, C2), dtype=jnp.float32) * 0.5
    label_b = jax.random.randint(kb, (B2,), 0, C2, dtype=jnp.int32)
    label_b = label_b.at[0].set(-1)
    margin_b = m_param + std_param * jax.random.normal(kc, (B2,), dtype=jnp.float32)

    ref_b = _reference(logits_b, label_b, margin_b, s_param)
    out_b = elastic_cosface(logits_b, label_b, margin_b, s=s_param, tb=8, tc=256)
    out_b = jax.block_until_ready(out_b)
    assert jnp.allclose(out_b, ref_b, atol=1e-5), "mismatch vs reference (test 2)"

    # --- Test 3: bf16 in / bf16 out path (reduced HBM traffic); loose tolerance
    # since the final bf16 cast of s-scaled logits drops mantissa bits.
    logits_c = (jax.random.normal(kd, (B2, C2), dtype=jnp.float32) * 0.5
                ).astype(jnp.bfloat16)
    ref_c = _reference(logits_c, label_b, margin_b, s_param)
    out_c = elastic_cosface(logits_c, label_b, margin_b, s=s_param,
                            out_dtype=jnp.bfloat16)
    out_c = jax.block_until_ready(out_c)
    assert jnp.allclose(out_c.astype(jnp.float32), ref_c, atol=1.0, rtol=2e-2), \
        "mismatch vs reference (test 3, bf16)"

    print("KERNEL_OK")
</pallas_src>

<mosaic_0001>
module attributes {stable_mosaic.version = 11 : i64} {
  func.func @_elastic_cosface_kernel(%arg0: i32, %arg1: i32, %arg2: memref<8x1xi32, #tpu.memory_space<vmem>>, %arg3: memref<8x1xf32, #tpu.memory_space<vmem>>, %arg4: memref<8x128xf32, #tpu.memory_space<vmem>>, %arg5: memref<8x128xf32, #tpu.memory_space<vmem>>) attributes {dimension_semantics = [#tpu.dimension_semantics<parallel>, #tpu.dimension_semantics<parallel>], iteration_bounds = array<i64: 1, 2>, scalar_prefetch = 0 : i64, scratch_operands = 0 : i64, tpu.core_type = #tpu.core_type<tc>, window_params = [{transform_indices = @transform_0, window_bounds = array<i64: 8, 1>}, {transform_indices = @transform_1, window_bounds = array<i64: 8, 1>}, {transform_indices = @transform_2, window_bounds = array<i64: 8, 128>}, {transform_indices = @transform_3, window_bounds = array<i64: 8, 128>}]} {
    %c0 = arith.constant 0 : index
    %c0_0 = arith.constant 0 : index
    %0 = vector.load %arg2[%c0, %c0_0] : memref<8x1xi32, #tpu.memory_space<vmem>>, vector<8x1xi32>
    %c128_i32 = arith.constant 128 : i32
    %1 = arith.muli %arg1, %c128_i32 : i32
    %2 = vector.broadcast %1 : i32 to vector<8x1xi32>
    %3 = arith.subi %0, %2 : vector<8x1xi32>
    %4 = tpu.iota {dimensions = array<i32: 1>} : vector<8x128xi32>
    %5 = vector.broadcast %3 : vector<8x1xi32> to vector<8x128xi32>
    %6 = arith.cmpi eq, %4, %5 : vector<8x128xi32>
    %c0_1 = arith.constant 0 : index
    %c0_2 = arith.constant 0 : index
    %7 = vector.load %arg4[%c0_1, %c0_2] : memref<8x128xf32, #tpu.memory_space<vmem>>, vector<8x128xf32>
    %c0_3 = arith.constant 0 : index
    %c0_4 = arith.constant 0 : index
    %8 = vector.load %arg3[%c0_3, %c0_4] : memref<8x1xf32, #tpu.memory_space<vmem>>, vector<8x1xf32>
    %cst = arith.constant 0.000000e+00 : f32
    %9 = vector.shape_cast %8 : vector<8x1xf32> to vector<8x1xf32>
    %10 = vector.broadcast %9 : vector<8x1xf32> to vector<8x128xf32>
    %11 = vector.broadcast %cst : f32 to vector<8x128xf32>
    %12 = arith.select %6, %10, %11 : vector<8x128xi1>, vector<8x128xf32>
    %13 = arith.subf %7, %12 : vector<8x128xf32>
    %cst_5 = arith.constant 6.400000e+01 : f32
    %14 = vector.broadcast %cst_5 : f32 to vector<8x128xf32>
    %15 = arith.mulf %13, %14 : vector<8x128xf32>
    %c0_6 = arith.constant 0 : index
    %c0_7 = arith.constant 0 : index
    %16 = vector.load %arg5[%c0_6, %c0_7] : memref<8x128xf32, #tpu.memory_space<vmem>>, vector<8x128xf32>
    tpu.vector_store %arg5[%c0_6, %c0_7], %15 {strides = array<i32>} : memref<8x128xf32, #tpu.memory_space<vmem>>, vector<8x128xf32>,
    return
  }
  func.func @transform_0(%arg0: i32, %arg1: i32) -> (i32, i32) {
    %c0_i32 = arith.constant 0 : i32
    %c0_i32_0 = arith.constant 0 : i32
    return %arg0, %c0_i32 : i32, i32
  }
  func.func @transform_1(%arg0: i32, %arg1: i32) -> (i32, i32) {
    %c0_i32 = arith.constant 0 : i32
    %c0_i32_0 = arith.constant 0 : i32
    return %arg0, %c0_i32 : i32, i32
  }
  func.func @transform_2(%arg0: i32, %arg1: i32) -> (i32, i32) {
    %c0_i32 = arith.constant 0 : i32
    return %arg0, %arg1 : i32, i32
  }
  func.func @transform_3(%arg0: i32, %arg1: i32) -> (i32, i32) {
    %c0_i32 = arith.constant 0 : i32
    return %arg0, %arg1 : i32, i32
  }
}

</mosaic_0001>

<llo_original>
// kernel: tpu_custom_call.1
$region0: #{tpu_custom_call.1}
  #allocation0 [shape = 'u32[]', space=smem, size = 0x4, offset = 0x4, fixed_abs, tag = 'smem constant byte address 0x4 - core index']
  #allocation1 [shape = 'u32[144,128]{1,0:T(1,128)}', space=vmem, size = 0x12000, scoped, tag = 'internal scratch']
  %s0 = inlined_call_operand.vmem [shape: s32[8,1], index: 0, kind: input, shape index: {}]
  %s1 = inlined_call_operand.vmem [shape: f32[8,1], index: 1, kind: input, shape index: {}]
  %s2 = inlined_call_operand.hbm [shape: f32[8,256], index: 2, kind: input, shape index: {}, may-alias: {2,3}]
  %s3 = inlined_call_operand.hbm [shape: f32[8,256], index: 3, kind: output, shape index: {}, may-alias: {2,3}]
  %s4 = sld [smem:[#allocation0]]
  $region49: #{tpu_custom_call.1} parent=0
    _
  %s6 = ssub.s32 1, %s4
  %s7 = scalar_select 0, %s6, %s4
  $region1: #{tpu_custom_call.1} parent=0
    #allocation2 [shape = 'u8[8192]{0}', space=vmem, size = 0x2000, scoped, tag = 'input window, operand 2']
    #allocation3 [shape = 's32[2]{0}', space=sflag, size = 0x8, scoped, tag = 'scoped memory for tpu_custom_call.1']
    #allocation4 [shape = 's32[2]{0}', space=sflag, size = 0x8, scoped, tag = 'scoped memory for tpu_custom_call.1']
    #allocation5 [shape = 'u8[8192]{0}', space=vmem, size = 0x2000, scoped, tag = 'output window, operand 0']
    %8 = vsyncpa [#allocation3], 0
    %s9 = scalar_lea.sflag [#allocation3], 1
    %10 = vsyncpa %s9, 0
    %11 = vsyncpa [#allocation4], 0
    %s12 = scalar_lea.sflag [#allocation4], 1
    %13 = vsyncpa %s12, 0
    loop: start=0, step=1, limit=4
    $region2: #{tpu_custom_call.1} parent=1 // loop_pre_header
      _
    $region3: #{tpu_custom_call.1} parent=1 // loop_header
      %s15 = sphi 0, %s19
      %p16 = scmp.ge.s32.totalorder %s15, 4
      %s22 = sphi 0, %s34
      %s23 = sphi 0, %s30
      %s24 = sphi 0, %s22
      %s25 = sphi 0, %s23
      %s26 = sphi 0, %s24
      %s27 = sphi 0, %s25
      %s37 = sphi 0, %s39
      %s40 = sphi 0, %s37
      %s41 = sphi 0, %s40
      %s57 = sphi 0, %s41
      %s63 = sphi 0, %s65
      %s66 = sphi 0, %s63
      %s67 = sphi 0, %s66
      %s83 = sphi 0, %s67
      %s91 = sphi 0, %s93
      %s94 = sphi 0, %s91
      %s95 = sphi 0, %s94
      %s111 = sphi 0, %s95
      %s119 = sphi 0, %s121
      %s122 = sphi 0, %s119
      %s123 = sphi 0, %s122
      %s139 = sphi 0, %s123
    $region4: #{tpu_custom_call.1} parent=1 // loop_header_branch
      %18 = sbr.rel (%p16) target = $region8
    $region5: #{tpu_custom_call.1} parent=1 // loop_body
      %s20 = ssub.s32 %s15, 1
      %s21 = ssub.s32 %s15, 2
      %s28 = sadd.s32 1, %s23
      %p29 = scmp.ge.s32.totalorder %s28, 2
      %s30 = scalar_select %p29, 0, %s28
      %s31 = sadd.s32 1, %s22
      %s32 = scalar_select %p29, %s31, %s22
      %p33 = scmp.ge.s32.totalorder %s32, 1
      %s34 = scalar_select %p33, 0, %s32
      %s35 = ssub.s32 %s22, %s34
      %p36 = scmp.eq.s32.totalorder %s35, 0
      %s38 = sadd.s32 %s37, 1
      %s39 = scalar_select %p36, %s37, %s38
      %p42 = pneg %p36
      %p43 = scmp.eq.s32.totalorder %s15, 1
      %p44 = por %p42, %p43
      %p45 = scmp.ne.s32.totalorder %s37, %s40
      %p46 = scmp.eq.s32.totalorder %s15, 0
      %p47 = por %p45, %p46
      %p48 = scmp.ne.s32.totalorder %s37, %s40
      %p49 = scmp.eq.s32.totalorder %s20, 1
      %p50 = por %p48, %p49
      %p51 = scmp.ne.s32.totalorder %s40, %s41
      %p52 = scmp.eq.s32.totalorder %s20, 0
      %p53 = por %p51, %p52
      %p54 = scmp.ne.s32.totalorder %s40, %s41
      %p55 = scmp.eq.s32.totalorder %s21, 1
      %p56 = por %p54, %p55
      %p58 = scmp.ne.s32.totalorder %s41, %s57
      %p59 = scmp.eq.s32.totalorder %s21, 0
      %p60 = por %p58, %p59
      %s61 = ssub.s32 %s22, %s34
      %p62 = scmp.eq.s32.totalorder %s61, 0
      %s64 = sadd.s32 %s63, 1
      %s65 = scalar_select %p62, %s63, %s64
      %p68 = pneg %p62
      %p69 = scmp.eq.s32.totalorder %s15, 1
      %p70 = por %p68, %p69
      %p71 = scmp.ne.s32.totalorder %s63, %s66
      %p72 = scmp.eq.s32.totalorder %s15, 0
      %p73 = por %p71, %p72
      %p74 = scmp.ne.s32.totalorder %s63, %s66
      %p75 = scmp.eq.s32.totalorder %s20, 1
      %p76 = por %p74, %p75
      %p77 = scmp.ne.s32.totalorder %s66, %s67
      %p78 = scmp.eq.s32.totalorder %s20, 0
      %p79 = por %p77, %p78
      %p80 = scmp.ne.s32.totalorder %s66, %s67
      %p81 = scmp.eq.s32.totalorder %s21, 1
      %p82 = por %p80, %p81
      %p84 = scmp.ne.s32.totalorder %s67, %s83
      %p85 = scmp.eq.s32.totalorder %s21, 0
      %p86 = por %p84, %p85
      %s87 = ssub.s32 %s22, %s34
      %s88 = ssub.s32 %s23, %s30
      %s89 = sor.u32 %s87, %s88
      %p90 = scmp.eq.s32.totalorder %s89, 0
      %s92 = sadd.s32 %s91, 1
      %s93 = scalar_select %p90, %s91, %s92
      %p96 = pneg %p90
      %p97 = scmp.eq.s32.totalorder %s15, 1
      %p98 = por %p96, %p97
      %p99 = scmp.ne.s32.totalorder %s91, %s94
      %p100 = scmp.eq.s32.totalorder %s15, 0
      %p101 = por %p99, %p100
      %p102 = scmp.ne.s32.totalorder %s91, %s94
      %p103 = scmp.eq.s32.totalorder %s20, 1
      %p104 = por %p102, %p103
      %p105 = scmp.ne.s32.totalorder %s94, %s95
      %p106 = scmp.eq.s32.totalorder %s20, 0
      %p107 = por %p105, %p106
      %p108 = scmp.ne.s32.totalorder %s94, %s95
      %p109 = scmp.eq.s32.totalorder %s21, 1
      %p110 = por %p108, %p109
      %p112 = scmp.ne.s32.totalorder %s95, %s111
      %p113 = scmp.eq.s32.totalorder %s21, 0
      %p114 = por %p112, %p113
      %s115 = ssub.s32 %s22, %s34
      %s116 = ssub.s32 %s23, %s30
      %s117 = sor.u32 %s115, %s116
      %p118 = scmp.eq.s32.totalorder %s117, 0
      %s120 = sadd.s32 %s119, 1
      %s121 = scalar_select %p118, %s119, %s120
      %p124 = pneg %p118
      %p125 = scmp.eq.s32.totalorder %s15, 1
      %p126 = por %p124, %p125
      %p127 = scmp.ne.s32.totalorder %s119, %s122
      %p128 = scmp.eq.s32.totalorder %s15, 0
      %p129 = por %p127, %p128
      %p130 = scmp.ne.s32.totalorder %s119, %s122
      %p131 = scmp.eq.s32.totalorder %s20, 1
      %p132 = por %p130, %p131
      %p133 = scmp.ne.s32.totalorder %s122, %s123
      %p134 = scmp.eq.s32.totalorder %s20, 0
      %p135 = por %p133, %p134
      %p136 = scmp.ne.s32.totalorder %s122, %s123
      %p137 = scmp.eq.s32.totalorder %s21, 1
      %p138 = por %p136, %p137
      %p140 = scmp.ne.s32.totalorder %s123, %s139
      %p141 = scmp.eq.s32.totalorder %s21, 0
      %p142 = por %p140, %p141
      %p143 = scmp.le.s32.totalorder 1, %s15
      %p144 = scmp.lt.s32.totalorder %s15, 3
      %p145 = pnand %p143, %p144
      %p146 = pneg %p145
      // Predicated region
      $region9: #{tpu_custom_call.1} parent=5 // pred_check
        _
      $region10: #{tpu_custom_call.1} parent=5 // pred_check_branch
        %148 = sbr.rel (%p145) target = $region12
      $region11: #{tpu_custom_call.1} parent=5 // pred_region
        %s149 = ssub.s32 %s15, 1
        // Predicated region
        $region13: #{tpu_custom_call.1} parent=11 // pred_check
          %p150 = pneg %p53
        $region14: #{tpu_custom_call.1} parent=11 // pred_check_branch
          %152 = sbr.rel (%p150) target = $region16
        $region15: #{tpu_custom_call.1} parent=11 // pred_region
          %p153 = scmp.lt.s32.totalorder %s24, 0
          %s154 = scalar_select %p153, %s24, 0
          %s155 = smul.addr %s154, 8
          %s156 = scalar_lea.vmem %s0, %s155
        $region16: #{tpu_custom_call.1} parent=11 // pred_fallthru
          _
        // Predicated region
        $region17: #{tpu_custom_call.1} parent=11 // pred_check
          %p157 = pneg %p79
        $region18: #{tpu_custom_call.1} parent=11 // pred_check_branch
          %159 = sbr.rel (%p157) target = $region20
        $region19: #{tpu_custom_call.1} parent=11 // pred_region
          %p160 = scmp.lt.s32.totalorder %s24, 0
          %s161 = scalar_select %p160, %s24, 0
          %s162 = smul.addr %s161, 8
          %s163 = scalar_lea.vmem %s1, %s162
        $region20: #{tpu_custom_call.1} parent=11 // pred_fallthru
          _
      $region12: #{tpu_custom_call.1} parent=5 // pred_fallthru
        _
      %p164 = scmp.lt.s32.totalorder %s15, 2
      // Predicated region
      $region21: #{tpu_custom_call.1} parent=5 // pred_check
        %p165 = pneg %p164
      $region22: #{tpu_custom_call.1} parent=5 // pred_check_branch
        %167 = sbr.rel (%p165) target = $region24
      $region23: #{tpu_custom_call.1} parent=5 // pred_region
        // Predicated region
        $region25: #{tpu_custom_call.1} parent=23 // pred_check
          %p168 = pneg %p101
        $region26: #{tpu_custom_call.1} parent=23 // pred_check_branch
          %170 = sbr.rel (%p168) target = $region28
        $region27: #{tpu_custom_call.1} parent=23 // pred_region
          %s171 = sand.u32 %s91, 1
          %s172 = scalar_lea.sflag [#allocation3], %s171
          %s173 = sand.u32 %s91, 1
          %s174 = smul.addr %s173, 8
          %s175 = scalar_lea.vmem [#allocation2], %s174
          %s177 = ssub.s32 128, 128
          %178 = vsyncadd %s172, %s177
          %s179 = smul.addr %s22, 2
          %s180 = sadd.s32 %s23, %s179
          %s181 = smul.addr %s180, 128
          %s182 = scalar_lea.hbm %s2, %s181
          %s184 = sshll.u32 %s175, 4
          %s185 = int_to_ptr.vmem [resolvable:$true] %s184
          %187 = dma.hbm_to_vmem [thread:$0]  %s182, 128, %s185, %s172
        $region28: #{tpu_custom_call.1} parent=23 // pred_fallthru
          _
      $region24: #{tpu_custom_call.1} parent=5 // pred_fallthru
        _
      %p188 = scmp.le.s32.totalorder 1, %s15
      %p189 = scmp.lt.s32.totalorder %s15, 3
      %p190 = pnand %p188, %p189
      %p191 = pneg %p190
      // Predicated region
      $region29: #{tpu_custom_call.1} parent=5 // pred_check
        _
      $region30: #{tpu_custom_call.1} parent=5 // pred_check_branch
        %193 = sbr.rel (%p190) target = $region32
      $region31: #{tpu_custom_call.1} parent=5 // pred_region
        %s194 = ssub.s32 %s15, 1
        %s195 = sand.u32 %s94, 1
        %s196 = scalar_lea.sflag [#allocation3], %s195
        %s197 = sand.u32 %s94, 1
        %s198 = smul.addr %s197, 8
        %s199 = scalar_lea.vmem [#allocation2], %s198
        // Predicated region
        $region33: #{tpu_custom_call.1} parent=31 // pred_check
          %p200 = pneg %p107
        $region34: #{tpu_custom_call.1} parent=31 // pred_check_branch
          %202 = sbr.rel (%p200) target = $region36
        $region35: #{tpu_custom_call.1} parent=31 // pred_region
          %203 = dma.done %s196, 128
        $region36: #{tpu_custom_call.1} parent=31 // pred_fallthru
          _
        %p204 = scmp.lt.s32.totalorder %s24, 0
        %s205 = scalar_select %p204, %s24, 0
        %s206 = smul.addr %s205, 8
        %s207 = scalar_lea.vmem %s0, %s206
        %p208 = pneg %p53
        %p209 = pneg %p50
        %p210 = scmp.lt.s32.totalorder %s24, 0
        %s211 = scalar_select %p210, %s24, 0
        %s212 = smul.addr %s211, 8
        %s213 = scalar_lea.vmem %s1, %s212
        %p214 = pneg %p79
        %p215 = pneg %p76
        %s216 = sand.u32 %s94, 1
        %s217 = scalar_lea.sflag [#allocation3], %s216
        %s218 = sand.u32 %s94, 1
        %s219 = smul.addr %s218, 8
        %s220 = scalar_lea.vmem [#allocation2], %s219
        %p221 = pneg %p107
        %p222 = pneg %p104
        %p223 = pneg %p135
        %p224 = pneg %p132
        %s225 = sand.u32 %s122, 1
        %s226 = scalar_lea.sflag [#allocation4], %s225
        %s227 = sand.u32 %s122, 1
        %s228 = smul.addr %s227, 8
        %s229 = scalar_lea.vmem [#allocation5], %s228
        %p230 = scmp.lt.s32.totalorder %s24, 0
        %s231 = scalar_select %p230, %s24, 0
        %s232 = smul.addr %s231, 8
        %s233 = scalar_lea.vmem %s0, %s232
        %p234 = scmp.lt.s32.totalorder %s24, 0
        %s235 = scalar_select %p234, %s24, 0
        %s236 = smul.addr %s235, 8
        %s237 = scalar_lea.vmem %s1, %s236
        %v238 = vld [vmem:[%s233] sm:$0xff]
        %s239 = smul.u32 %s25, 128
        %v240 = vstv %s239
        %v241 = vsub.s32 %v238, %v240
        %v242 = vlaneseq
        %v243 = vand.u32 %v242, 127
        %244 = vset.pattern.permute.xlu0 0
        %245 = vperm.xlu0 %244, %v241
        %v246 = vpop.permute.xlu0 %245
        %vm247 = vcmp.eq.s32.totalorder %v243, %v246
        %v248 = vld [vmem:[%s199] sm:$0xff]
        %v249 = vld [vmem:[%s237] sm:$0xff]
        %251 = vset.pattern.permute.xlu0 0
        %252 = vperm.xlu0 %251, %v249
        %v253 = vpop.permute.xlu0 %252
        %v255 = vsel %vm247, %v253, 0.0
        %v256 = vsub.f32 %v248, %v255
        %v257 = vmul.f32 %v256, 64.0
        %258 = vst [vmem:[%s229] sm:$0xff] %v257
        %s259 = sand.u32 %s122, 1
        %s260 = scalar_lea.sflag [#allocation4], %s259
        %s261 = sand.u32 %s122, 1
        %s262 = smul.addr %s261, 8
        %s263 = scalar_lea.vmem [#allocation5], %s262
        // Predicated region
        $region37: #{tpu_custom_call.1} parent=31 // pred_check
          %p264 = pneg %p132
        $region38: #{tpu_custom_call.1} parent=31 // pred_check_branch
          %266 = sbr.rel (%p264) target = $region40
        $region39: #{tpu_custom_call.1} parent=31 // pred_region
          %s268 = ssub.s32 128, 128
          %269 = vsyncadd %s260, %s268
          %s270 = smul.addr %s24, 2
          %s271 = sadd.s32 %s25, %s270
          %s272 = smul.addr %s271, 128
          %s273 = scalar_lea.hbm %s3, %s272
          %s275 = sshll.u32 %s263, 4
          %s276 = int_to_ptr.vmem [resolvable:$true] %s275
          %278 = dma.vmem_to_hbm [thread:$0]  %s276, 128, %s273, %s260
        $region40: #{tpu_custom_call.1} parent=31 // pred_fallthru
          _
      $region32: #{tpu_custom_call.1} parent=5 // pred_fallthru
        _
      %p279 = scmp.le.s32.totalorder 2, %s15
      // Predicated region
      $region41: #{tpu_custom_call.1} parent=5 // pred_check
        %p280 = pneg %p279
      $region42: #{tpu_custom_call.1} parent=5 // pred_check_branch
        %282 = sbr.rel (%p280) target = $region44
      $region43: #{tpu_custom_call.1} parent=5 // pred_region
        %s283 = ssub.s32 %s15, 2
        // Predicated region
        $region45: #{tpu_custom_call.1} parent=43 // pred_check
          %p284 = pneg %p138
        $region46: #{tpu_custom_call.1} parent=43 // pred_check_branch
          %286 = sbr.rel (%p284) target = $region48
        $region47: #{tpu_custom_call.1} parent=43 // pred_region
          %s287 = sand.u32 %s123, 1
          %s288 = scalar_lea.sflag [#allocation4], %s287
          %s289 = sand.u32 %s123, 1
          %s290 = smul.addr %s289, 8
          %s291 = scalar_lea.vmem [#allocation5], %s290
          %292 = dma.done %s288, 128
        $region48: #{tpu_custom_call.1} parent=43 // pred_fallthru
          _
      $region44: #{tpu_custom_call.1} parent=5 // pred_fallthru
        _
    $region6: #{tpu_custom_call.1} parent=1 // loop_footer
      %s19 = sadd.s32 1, %s15
    $region7: #{tpu_custom_call.1} parent=1 // loop_footer_branch
      %14 = sbr.rel target = $region3
    $region8: #{tpu_custom_call.1} parent=1 // loop_exit
      _
    %293 = vsyncpa [#allocation3], 1
    %s294 = scalar_lea.sflag [#allocation3], 1
    %295 = vsyncpa %s294, 1
    %296 = vsyncpa [#allocation4], 1
    %s297 = scalar_lea.sflag [#allocation4], 1
    %298 = vsyncpa %s297, 1

</llo_original>
